<compile_context>
chip_gen: v7x
topology: tpu7x:2x2x1
jax: 0.10.0
libtpu: 0.0.40
codegen_flags: <defaults>
</compile_context>

<pallas_src>
import jax
import jax.numpy as jnp
from jax import lax
from jax.experimental import pallas as pl
from jax.experimental.pallas import tpu as pltpu

_VMEM_LIMIT = 64 * 1024 * 1024          # safe on v5e/v6e (128 MiB) and v7x (64 MiB)
_INV_SQRT2 = 0.7071067811865476


def _mosaic_params(*sem):
    return pltpu.CompilerParams(dimension_semantics=tuple(sem),
                                vmem_limit_bytes=_VMEM_LIMIT)


def _row_tile(n, target=1024):
    """Largest row tile <= target that divides n (multiple of 8), else full n."""
    if n <= target:
        return n
    for t in (2048, 1024, 512, 256, 128, 64, 32, 16, 8):
        if t <= target and n % t == 0:
            return t
    return n


def _pick_group_tile(g, n, d):
    """How many attention head-groups to process per grid step."""
    per_group = 4 * (4 * n * d + n * n)            # q,k,v,o + logits (f32 bytes)
    max_gt = max(1, min(16, (4 * 1024 * 1024) // max(per_group, 1)))
    gt = 1
    for cand in range(1, int(max_gt) + 1):
        if g % cand == 0:
            gt = cand
    return gt


# ----------------------------------------------------------------------------
# Pallas kernels
# ----------------------------------------------------------------------------

def _matmul_kernel(x_ref, w_ref, o_ref):
    # x: (TN, Cin), w: (Cin, Cout) -> (TN, Cout); native-dtype MXU, f32 accum.
    o_ref[...] = jnp.dot(x_ref[...], w_ref[...],
                         preferred_element_type=jnp.float32).astype(o_ref.dtype)


def _ln_matmul_kernel(x_ref, g_ref, b_ref, w_ref, o_ref):
    # Fused WithBias-LayerNorm (f32 statistics) + 1x1 conv matmul.
    x = x_ref[...].astype(jnp.float32)                   # (TN, C)
    mu = jnp.mean(x, axis=-1, keepdims=True)
    xc = x - mu
    var = jnp.mean(xc * xc, axis=-1, keepdims=True)
    y = xc * lax.rsqrt(var + 1e-5)
    y = y * g_ref[...].astype(jnp.float32) + b_ref[...].astype(jnp.float32)
    o_ref[...] = jnp.dot(y.astype(w_ref.dtype), w_ref[...],
                         preferred_element_type=jnp.float32).astype(o_ref.dtype)


def _dw3_kernel(xp_ref, w_ref, o_ref):
    # Depthwise 3x3: xp (H+2, W+2, C) padded, w (9, 1, C), o (H, W, C).
    # TODO(synk): row-strip halo tiling (instead of one image per grid step).
    H, W, C = o_ref.shape
    acc = jnp.zeros((H, W, C), jnp.float32)
    for dy in range(3):
        for dx in range(3):
            acc = acc + (xp_ref[dy:dy + H, dx:dx + W, :].astype(jnp.float32)
                         * w_ref[dy * 3 + dx].astype(jnp.float32))
    o_ref[...] = acc.astype(o_ref.dtype)


def _dw3_gate_kernel(x1p_ref, x2p_ref, w1_ref, w2_ref, o_ref):
    # Fused: depthwise 3x3 on both channel halves + exact GELU gate.
    H, W, Ch = o_ref.shape
    a1 = jnp.zeros((H, W, Ch), jnp.float32)
    a2 = jnp.zeros((H, W, Ch), jnp.float32)
    for dy in range(3):
        for dx in range(3):
            a1 = a1 + (x1p_ref[dy:dy + H, dx:dx + W, :].astype(jnp.float32)
                       * w1_ref[dy * 3 + dx].astype(jnp.float32))
            a2 = a2 + (x2p_ref[dy:dy + H, dx:dx + W, :].astype(jnp.float32)
                       * w2_ref[dy * 3 + dx].astype(jnp.float32))
    g = 0.5 * a1 * (1.0 + lax.erf(a1 * _INV_SQRT2))
    o_ref[...] = (g * a2).astype(o_ref.dtype)


def _scale_gate_kernel(x1_ref, x2_ref, s1_ref, s2_ref, o_ref):
    # Fused: depthwise 1x1 (per-channel scale) on both halves + GELU gate.
    a1 = x1_ref[...].astype(jnp.float32) * s1_ref[...].astype(jnp.float32)
    a2 = x2_ref[...].astype(jnp.float32) * s2_ref[...].astype(jnp.float32)
    g = 0.5 * a1 * (1.0 + lax.erf(a1 * _INV_SQRT2))
    o_ref[...] = (g * a2).astype(o_ref.dtype)


def _attn_kernel(q_ref, k_ref, v_ref, t_ref, o_ref):
    # q,k,v,o: (Gt, N, D) batched head-groups; t_ref: SMEM (G,) temperatures.
    Gt = q_ref.shape[0]
    g0 = pl.program_id(0) * Gt
    for i in range(Gt):
        q = q_ref[i].astype(jnp.float32)                 # (N, D)
        k = k_ref[i].astype(jnp.float32)
        v = v_ref[i]
        qn = q * lax.rsqrt(jnp.maximum(jnp.sum(q * q, -1, keepdims=True), 1e-24))
        kn = k * lax.rsqrt(jnp.maximum(jnp.sum(k * k, -1, keepdims=True), 1e-24))
        logits = lax.dot_general(qn, kn, (((1,), (1,)), ((), ())),
                                 preferred_element_type=jnp.float32)
        logits = logits * t_ref[g0 + i]
        logits = logits - jnp.max(logits, axis=-1, keepdims=True)
        e = jnp.exp(logits)
        p = e * pl.reciprocal(jnp.sum(e, axis=-1, keepdims=True), approx=True)
        o_ref[i] = jnp.dot(p.astype(v.dtype), v,
                           preferred_element_type=jnp.float32).astype(o_ref.dtype)


# ----------------------------------------------------------------------------
# Pallas wrappers
# ----------------------------------------------------------------------------

@jax.jit
def matmul(x, w):
    # x: (B, N, Cin), w: (Cin, Cout) -> (B, N, Cout), row-tiled.
    B, N, Cin = x.shape
    Cout = w.shape[1]
    tn = _row_tile(N)
    return pl.pallas_call(
        _matmul_kernel,
        out_shape=jax.ShapeDtypeStruct((B, N, Cout), x.dtype),
        grid=(B, N // tn),
        in_specs=[pl.BlockSpec((None, tn, Cin), lambda b, t: (b, t, 0)),
                  pl.BlockSpec((Cin, Cout), lambda b, t: (0, 0))],
        out_specs=pl.BlockSpec((None, tn, Cout), lambda b, t: (b, t, 0)),
        compiler_params=_mosaic_params("parallel", "parallel"),
    )(x, w)


@jax.jit
def ln_matmul(x, gamma, beta, w):
    # Fused LayerNorm (over C) + 1x1 conv matmul.  x: (B, N, C).
    B, N, C = x.shape
    Cout = w.shape[1]
    tn = _row_tile(N)
    return pl.pallas_call(
        _ln_matmul_kernel,
        out_shape=jax.ShapeDtypeStruct((B, N, Cout), x.dtype),
        grid=(B, N // tn),
        in_specs=[pl.BlockSpec((None, tn, C), lambda b, t: (b, t, 0)),
                  pl.BlockSpec((1, C), lambda b, t: (0, 0)),
                  pl.BlockSpec((1, C), lambda b, t: (0, 0)),
                  pl.BlockSpec((C, Cout), lambda b, t: (0, 0))],
        out_specs=pl.BlockSpec((None, tn, Cout), lambda b, t: (b, t, 0)),
        compiler_params=_mosaic_params("parallel", "parallel"),
    )(x, gamma.reshape(1, C), beta.reshape(1, C), w)


@jax.jit
def conv3x3(x, w):
    # Dense 3x3 conv (stride 1, pad 1, no bias) as im2col + one wide MXU matmul.
    B, H, W, Cin = x.shape
    Cout = w.shape[-1]
    xp = jnp.pad(x, ((0, 0), (1, 1), (1, 1), (0, 0)))
    cols = jnp.concatenate(
        [xp[:, dy:dy + H, dx:dx + W, :] for dy in range(3) for dx in range(3)],
        axis=-1)                                         # (B, H, W, 9*Cin)
    wf = w.reshape(9 * Cin, Cout)
    y = matmul(cols.reshape(B, H * W, 9 * Cin), wf)
    return y.reshape(B, H, W, Cout)


@jax.jit
def dwconv3x3(x, w):
    # Depthwise 3x3, x: (B, H, W, C), w: (3, 3, C).
    B, H, W, C = x.shape
    xp = jnp.pad(x, ((0, 0), (1, 1), (1, 1), (0, 0)))
    wf = w.reshape(9, 1, C)
    return pl.pallas_call(
        _dw3_kernel,
        out_shape=jax.ShapeDtypeStruct((B, H, W, C), x.dtype),
        grid=(B,),
        in_specs=[pl.BlockSpec((None, H + 2, W + 2, C), lambda b: (b, 0, 0, 0)),
                  pl.BlockSpec((9, 1, C), lambda b: (0, 0, 0))],
        out_specs=pl.BlockSpec((None, H, W, C), lambda b: (b, 0, 0, 0)),
        compiler_params=_mosaic_params("parallel"),
    )(xp, wf)


@jax.jit
def dwconv3x3_gate(x1, x2, w1, w2):
    # Fused depthwise 3x3 (both halves) + GELU gate: gelu(dw(x1)) * dw(x2).
    B, H, W, Ch = x1.shape
    x1p = jnp.pad(x1, ((0, 0), (1, 1), (1, 1), (0, 0)))
    x2p = jnp.pad(x2, ((0, 0), (1, 1), (1, 1), (0, 0)))
    w1f = w1.reshape(9, 1, Ch)
    w2f = w2.reshape(9, 1, Ch)
    xspec = pl.BlockSpec((None, H + 2, W + 2, Ch), lambda b: (b, 0, 0, 0))
    wspec = pl.BlockSpec((9, 1, Ch), lambda b: (0, 0, 0))
    return pl.pallas_call(
        _dw3_gate_kernel,
        out_shape=jax.ShapeDtypeStruct((B, H, W, Ch), x1.dtype),
        grid=(B,),
        in_specs=[xspec, xspec, wspec, wspec],
        out_specs=pl.BlockSpec((None, H, W, Ch), lambda b: (b, 0, 0, 0)),
        compiler_params=_mosaic_params("parallel"),
    )(x1p, x2p, w1f, w2f)


@jax.jit
def scale_gate(x1, x2, s1, s2):
    # Fused per-channel scale (depthwise 1x1) + GELU gate, row-tiled.
    B, N, Ch = x1.shape
    tn = _row_tile(N)
    xspec = pl.BlockSpec((None, tn, Ch), lambda b, t: (b, t, 0))
    sspec = pl.BlockSpec((1, Ch), lambda b, t: (0, 0))
    return pl.pallas_call(
        _scale_gate_kernel,
        out_shape=jax.ShapeDtypeStruct((B, N, Ch), x1.dtype),
        grid=(B, N // tn),
        in_specs=[xspec, xspec, sspec, sspec],
        out_specs=xspec,
        compiler_params=_mosaic_params("parallel", "parallel"),
    )(x1, x2, s1.reshape(1, Ch), s2.reshape(1, Ch))


@jax.jit
def attention(q, k, v, temp):
    # q,k,v: (G, N, D) head-groups, temp: (G,) -> softmax(norm(q)norm(k)^T t) v
    G, N, D = q.shape
    gt = _pick_group_tile(G, N, D)
    spec = pl.BlockSpec((gt, N, D), lambda g: (g, 0, 0))
    return pl.pallas_call(
        _attn_kernel,
        out_shape=jax.ShapeDtypeStruct((G, N, D), q.dtype),
        grid=(G // gt,),
        in_specs=[spec, spec, spec,
                  pl.BlockSpec(memory_space=pltpu.MemorySpace.SMEM)],
        out_specs=spec,
        compiler_params=_mosaic_params("parallel"),
    )(q, k, v, temp.astype(jnp.float32))


# ----------------------------------------------------------------------------
# Module forward functions (glue in plain JAX; compute in Pallas)
# ----------------------------------------------------------------------------

def pointwise4(x, w):
    B, H, W, C = x.shape
    return matmul(x.reshape(B, H * W, C), w).reshape(B, H, W, w.shape[1])


def _qkv(x, ln, p):
    # Fused LN + qkv 1x1 conv, then depthwise 3x3, then channel chunk.
    B, H, W, C = x.shape
    qkv = ln_matmul(x.reshape(B, H * W, C), ln['weight'], ln['bias'], p['qkv_w'])
    qkv = dwconv3x3(qkv.reshape(B, H, W, 3 * C), p['qkv_dw'])
    return jnp.split(qkv, 3, axis=-1)


def c_msa(x, ln, p, num_heads):
    B, H, W, C = x.shape
    q0, k0, v0 = _qkv(x, ln, p)
    cph = C // num_heads

    def to_heads(t):  # 'b (head c) h w -> (b head) c (h w)'
        t = t.transpose(0, 3, 1, 2).reshape(B, num_heads, cph, H * W)
        return t.reshape(B * num_heads, cph, H * W)

    q, k, v = to_heads(q0), to_heads(k0), to_heads(v0)
    temp = jnp.tile(p['temperature'], B)
    out = attention(q, k, v, temp)                       # (B*head, cph, HW)
    out = out.reshape(B, num_heads * cph, H, W).transpose(0, 2, 3, 1)
    return pointwise4(out, p['proj_w'])


def a_msa(x, ln, p, num_heads_v):
    B, H, W, C = x.shape
    q0, k0, v0 = _qkv(x, ln, p)
    wph = W // num_heads_v

    def to_heads(t):  # 'b c h (head w) -> (b head) w (c h)'
        t = t.reshape(B, H, num_heads_v, wph, C)
        t = t.transpose(0, 2, 3, 4, 1)                   # (B, head, wph, C, H)
        return t.reshape(B * num_heads_v, wph, C * H)

    q, k, v = map(to_heads, (q0, k0, v0))
    temp = jnp.tile(p['temperature'], B)
    out = attention(q, k, v, temp)                       # (B*head, wph, C*H)
    out = out.reshape(B, num_heads_v, wph, C, H).transpose(0, 4, 1, 2, 3)
    out = out.reshape(B, H, W, C)
    return pointwise4(out, p['proj_w'])


def ia_msa(x, ln, p, num_heads_v):
    B, H, W, C = x.shape
    q0, k0, v0 = _qkv(x, ln, p)
    hph = H // num_heads_v

    def to_heads(t):  # 'b c (head h) w -> (b w head) h c'
        t = t.reshape(B, num_heads_v, hph, W, C)
        t = t.transpose(0, 3, 1, 2, 4)                   # (B, W, head, hph, C)
        return t.reshape(B * W * num_heads_v, hph, C)

    q, k, v = map(to_heads, (q0, k0, v0))
    temp = jnp.tile(p['temperature'], B * W)
    out = attention(q, k, v, temp)                       # (B*W*head, hph, C)
    out = out.reshape(B, W, num_heads_v, hph, C).transpose(0, 2, 3, 1, 4)
    out = out.reshape(B, H, W, C)
    return pointwise4(out, p['proj_w'])


def feed_forward(x, ln, p):
    B, H, W, C = x.shape
    hidden = p['proj_out_w'].shape[0]
    y = ln_matmul(x.reshape(B, H * W, C), ln['weight'], ln['bias'], p['proj_in_w'])
    y = y.reshape(B, H, W, 2 * hidden)
    g = dwconv3x3_gate(y[..., :hidden], y[..., hidden:],
                       p['dw_w'][:, :, :hidden], p['dw_w'][:, :, hidden:])
    return matmul(g.reshape(B, H * W, hidden), p['proj_out_w']).reshape(B, H, W, C)


def feed_forward_v(x, ln, p):
    B, H, W, C = x.shape
    hidden = p['proj_out_w'].shape[0]
    y = ln_matmul(x.reshape(B, H * W, C), ln['weight'], ln['bias'], p['proj_in_w'])
    g = scale_gate(y[..., :hidden], y[..., hidden:],
                   p['dw_w'][:hidden], p['dw_w'][hidden:])
    return matmul(g, p['proj_out_w']).reshape(B, H, W, C)


def transformer_block(x, p, num_heads):
    x = x + c_msa(x, p['norm1'], p['cmsa'], num_heads)
    x = x + feed_forward(x, p['norm2'], p['ffn1'])
    return x


def transformer_block_v(x, p, num_heads, num_heads_v):
    x = x + c_msa(x, p['norm1'], p['cmsa'], num_heads)
    x = x + feed_forward(x, p['norm2'], p['ffn1'])
    x = x + a_msa(x, p['norm3'], p['amsa'], num_heads_v)
    x = x + feed_forward_v(x, p['norm4'], p['ffn2'])
    x = x + ia_msa(x, p['norm5'], p['iamsa'], num_heads_v)
    x = x + feed_forward_v(x, p['norm6'], p['ffn3'])
    x = x + c_msa(x, p['norm7'], p['cmsa2'], num_heads)
    x = x + feed_forward(x, p['norm8'], p['ffn4'])
    return x


def downsample(x, w):
    y = conv3x3(x, w)                                    # (B,H,W,C/2)
    B, H, W, C = y.shape
    y = y.reshape(B, H // 2, 2, W // 2, 2, C).transpose(0, 1, 3, 5, 2, 4)
    return y.reshape(B, H // 2, W // 2, C * 4)           # PixelUnshuffle(2)


def upsample(x, w):
    y = conv3x3(x, w)                                    # (B,H,W,2C)
    B, H, W, C4 = y.shape
    C = C4 // 4
    y = y.reshape(B, H, W, C, 2, 2).transpose(0, 1, 4, 2, 5, 3)
    return y.reshape(B, 2 * H, 2 * W, C)                 # PixelShuffle(2)


# ----------------------------------------------------------------------------
# Parameter initialization (deterministic, synthetic)
# ----------------------------------------------------------------------------

class ParamGen:
    def __init__(self, key):
        self.key = key

    def normal(self, shape, scale=0.02):
        self.key, sub = jax.random.split(self.key)
        return (jax.random.normal(sub, shape, jnp.float32) * scale)


def init_params(pg, dim, heads, heads_v, ffn, num_blocks, num_refine,
                inp_c=3, out_c=3):
    def msa_p(d, nh):
        return dict(temperature=jnp.ones((nh,), jnp.float32),
                    qkv_w=pg.normal((d, 3 * d)),
                    qkv_dw=pg.normal((3, 3, 3 * d)),
                    proj_w=pg.normal((d, d)))

    def ffn_p(d):
        h = int(d * ffn)
        return dict(proj_in_w=pg.normal((d, 2 * h)),
                    dw_w=pg.normal((3, 3, 2 * h)),
                    proj_out_w=pg.normal((h, d)))

    def ffn_v_p(d):
        h = int(d * ffn)
        return dict(proj_in_w=pg.normal((d, 2 * h)),
                    dw_w=pg.normal((2 * h,)),
                    proj_out_w=pg.normal((h, d)))

    def ln_p(d):
        return dict(weight=jnp.ones((d,), jnp.float32),
                    bias=jnp.zeros((d,), jnp.float32))

    def tb_p(d, nh):
        return dict(norm1=ln_p(d), cmsa=msa_p(d, nh),
                    norm2=ln_p(d), ffn1=ffn_p(d))

    def tbv_p(d, nh, nhv):
        return dict(norm1=ln_p(d), cmsa=msa_p(d, nh), norm2=ln_p(d), ffn1=ffn_p(d),
                    norm3=ln_p(d), amsa=msa_p(d, nhv), norm4=ln_p(d), ffn2=ffn_v_p(d),
                    norm5=ln_p(d), iamsa=msa_p(d, nhv), norm6=ln_p(d), ffn3=ffn_v_p(d),
                    norm7=ln_p(d), cmsa2=msa_p(d, nh), norm8=ln_p(d), ffn4=ffn_p(d))

    d1, d2, d3, d4 = dim, dim * 2, dim * 4, dim * 8
    return dict(
        patch_embed=pg.normal((3, 3, inp_c, d1)),
        encoder_level1=[tb_p(d1, heads[0]) for _ in range(num_blocks[0])],
        encoder_level1_v=tbv_p(d1, heads[0], heads_v[0]),
        down1_2=pg.normal((3, 3, d1, d1 // 2)),
        encoder_level2=[tb_p(d2, heads[1]) for _ in range(num_blocks[1])],
        encoder_level2_v=tbv_p(d2, heads[1], heads_v[1]),
        down2_3=pg.normal((3, 3, d2, d2 // 2)),
        encoder_level3=[tb_p(d3, heads[2]) for _ in range(num_blocks[2])],
        encoder_level3_v=tbv_p(d3, heads[2], heads_v[2]),
        down3_4=pg.normal((3, 3, d3, d3 // 2)),
        latent=[tb_p(d4, heads[3]) for _ in range(num_blocks[3])],
        up4_3=pg.normal((3, 3, d4, d4 * 2)),
        reduce_chan_level3=pg.normal((d4, d3)),
        decoder_level3=[tb_p(d3, heads[2]) for _ in range(num_blocks[2])],
        decoder_level3_v=tbv_p(d3, heads[2], heads_v[2]),
        up3_2=pg.normal((3, 3, d3, d3 * 2)),
        reduce_chan_level2=pg.normal((d3, d2)),
        decoder_level2=[tb_p(d2, heads[1]) for _ in range(num_blocks[1])],
        decoder_level2_v=tbv_p(d2, heads[1], heads_v[1]),
        up2_1=pg.normal((3, 3, d2, d2 * 2)),
        decoder_level1=[tb_p(d2, heads[0]) for _ in range(num_blocks[0])],
        decoder_level1_v=tbv_p(d2, heads[0], heads_v[0]),
        refinement=[tb_p(d2, heads[0]) for _ in range(num_refine)],
        output=pg.normal((3, 3, d2, out_c)),
    )


# ----------------------------------------------------------------------------
# Full OSAT_HFormer forward
# ----------------------------------------------------------------------------

def osat_hformer_forward(params, inp_img, heads, heads_v):
    x1 = conv3x3(inp_img, params['patch_embed'])
    for p in params['encoder_level1']:
        x1 = transformer_block(x1, p, heads[0])
    x1 = transformer_block_v(x1, params['encoder_level1_v'], heads[0], heads_v[0])

    x2 = downsample(x1, params['down1_2'])
    for p in params['encoder_level2']:
        x2 = transformer_block(x2, p, heads[1])
    x2 = transformer_block_v(x2, params['encoder_level2_v'], heads[1], heads_v[1])

    x3 = downsample(x2, params['down2_3'])
    for p in params['encoder_level3']:
        x3 = transformer_block(x3, p, heads[2])
    x3 = transformer_block_v(x3, params['encoder_level3_v'], heads[2], heads_v[2])

    x4 = downsample(x3, params['down3_4'])
    for p in params['latent']:
        x4 = transformer_block(x4, p, heads[3])

    d3 = upsample(x4, params['up4_3'])
    d3 = jnp.concatenate([d3, x3], axis=-1)
    d3 = pointwise4(d3, params['reduce_chan_level3'])
    for p in params['decoder_level3']:
        d3 = transformer_block(d3, p, heads[2])
    d3 = transformer_block_v(d3, params['decoder_level3_v'], heads[2], heads_v[2])

    d2 = upsample(d3, params['up3_2'])
    d2 = jnp.concatenate([d2, x2], axis=-1)
    d2 = pointwise4(d2, params['reduce_chan_level2'])
    for p in params['decoder_level2']:
        d2 = transformer_block(d2, p, heads[1])
    d2 = transformer_block_v(d2, params['decoder_level2_v'], heads[1], heads_v[1])

    d1 = upsample(d2, params['up2_1'])
    d1 = jnp.concatenate([d1, x1], axis=-1)
    for p in params['decoder_level1']:
        d1 = transformer_block(d1, p, heads[0])
    d1 = transformer_block_v(d1, params['decoder_level1_v'], heads[0], heads_v[0])

    for p in params['refinement']:  # TransformerBlock_Refine == TransformerBlock
        d1 = transformer_block(d1, p, heads[0])

    out = conv3x3(d1, params['output']) + inp_img
    return out


# ----------------------------------------------------------------------------
# Main
# ----------------------------------------------------------------------------

if __name__ == "__main__":
    # Small synthetic configuration (scaled down from defaults).
    DIM = 8
    HEADS = (1, 2, 4, 8)
    HEADS_V = (4, 2, 1, 1)
    FFN = 2.66
    NUM_BLOCKS = (1, 1, 1, 1)
    NUM_REFINE = 1
    B, H, W, CIN = 2, 8, 8, 3

    key = jax.random.PRNGKey(0)
    k_inp, k_par = jax.random.split(key)
    inp_img = jax.random.normal(k_inp, (B, H, W, CIN), jnp.float32)  # NHWC

    pg = ParamGen(k_par)
    params = init_params(pg, DIM, HEADS, HEADS_V, FFN, NUM_BLOCKS, NUM_REFINE,
                         inp_c=CIN, out_c=CIN)

    out = osat_hformer_forward(params, inp_img, HEADS, HEADS_V)
    out = jax.block_until_ready(out)
    assert out.shape == (B, H, W, CIN), out.shape
    assert bool(jnp.all(jnp.isfinite(out)))
    print("KERNEL_OK")
</pallas_src>

<mosaic_0001>
module attributes {stable_mosaic.version = 11 : i64} {
  func.func @_matmul_kernel(%arg0: i32, %arg1: i32, %arg2: memref<1x64x27xf32, #tpu.memory_space<vmem>>, %arg3: memref<27x8xf32, #tpu.memory_space<vmem>>, %arg4: memref<1x64x8xf32, #tpu.memory_space<vmem>>) attributes {dimension_semantics = [#tpu.dimension_semantics<parallel>, #tpu.dimension_semantics<parallel>], iteration_bounds = array<i64: 2, 1>, scalar_prefetch = 0 : i64, scratch_operands = 0 : i64, tpu.core_type = #tpu.core_type<tc>, window_params = [{transform_indices = @transform_0, window_bounds = array<i64: 1, 64, 27>}, {pipeline_mode = #tpu.pipeline_mode<synchronous>, transform_indices = @transform_1, window_bounds = array<i64: 27, 8>}, {transform_indices = @transform_2, window_bounds = array<i64: 1, 64, 8>}]} {
    %c0 = arith.constant 0 : index
    %c0_0 = arith.constant 0 : index
    %c0_1 = arith.constant 0 : index
    %0 = vector.load %arg2[%c0, %c0_0, %c0_1] : memref<1x64x27xf32, #tpu.memory_space<vmem>>, vector<1x64x27xf32>
    %1 = vector.shape_cast %0 : vector<1x64x27xf32> to vector<64x27xf32>
    %c0_2 = arith.constant 0 : index
    %c0_3 = arith.constant 0 : index
    %2 = vector.load %arg3[%c0_2, %c0_3] : memref<27x8xf32, #tpu.memory_space<vmem>>, vector<27x8xf32>
    %cst = arith.constant dense<0.000000e+00> : vector<64x8xf32>
    %3 = tpu.matmul %1, %2, %cst {dimension_numbers = #tpu.dot_dimension_numbers<[1], [0], [0], [1], [0, 0, 1, 1], [], []>} : vector<64x27xf32>, vector<27x8xf32>, vector<64x8xf32> -> vector<64x8xf32>
    %c0_4 = arith.constant 0 : index
    %c0_5 = arith.constant 0 : index
    %c0_6 = arith.constant 0 : index
    %4 = vector.load %arg4[%c0_4, %c0_5, %c0_6] : memref<1x64x8xf32, #tpu.memory_space<vmem>>, vector<1x64x8xf32>
    %5 = vector.shape_cast %4 : vector<1x64x8xf32> to vector<64x8xf32>
    %6 = vector.shape_cast %3 : vector<64x8xf32> to vector<1x64x8xf32>
    tpu.vector_store %arg4[%c0_4, %c0_5, %c0_6], %6 {strides = array<i32>} : memref<1x64x8xf32, #tpu.memory_space<vmem>>, vector<1x64x8xf32>,
    return
  }
  func.func @transform_0(%arg0: i32, %arg1: i32) -> (i32, i32, i32) {
    %c0_i32 = arith.constant 0 : i32
    %c0_i32_0 = arith.constant 0 : i32
    return %arg0, %arg1, %c0_i32 : i32, i32, i32
  }
  func.func @transform_1(%arg0: i32, %arg1: i32) -> (i32, i32) {
    %c0_i32 = arith.constant 0 : i32
    %c0_i32_0 = arith.constant 0 : i32
    %c0_i32_1 = arith.constant 0 : i32
    return %c0_i32, %c0_i32_0 : i32, i32
  }
  func.func @transform_2(%arg0: i32, %arg1: i32) -> (i32, i32, i32) {
    %c0_i32 = arith.constant 0 : i32
    %c0_i32_0 = arith.constant 0 : i32
    return %arg0, %arg1, %c0_i32 : i32, i32, i32
  }
}

</mosaic_0001>

<llo_original>
// kernel: matmul.1
$region0: #{matmul.1}
  #allocation0 [shape = 'u32[]', space=smem, size = 0x4, offset = 0x4, fixed_abs, tag = 'smem constant byte address 0x4 - core index']
  #allocation1 [shape = 'u32[144,128]{1,0:T(1,128)}', space=vmem, size = 0x12000, scoped, tag = 'internal scratch']
  %s0 = inlined_call_operand.hbm [shape: f32[2,64,27], index: 0, kind: input, shape index: {}]
  %s1 = inlined_call_operand.hbm [shape: f32[27,8], index: 1, kind: input, shape index: {}]
  %s2 = inlined_call_operand.hbm [shape: f32[2,64,8], index: 2, kind: output, shape index: {}]
  %s3 = sld [smem:[#allocation0]]
  $region49: #{matmul.1} parent=0
    _
  %s5 = ssub.s32 1, %s3
  %s6 = scalar_select 0, %s5, %s3
  $region1: #{matmul.1} parent=0
    #allocation2 [shape = 'u8[65536]{0}', space=vmem, size = 0x10000, scoped, tag = 'input window, operand 0']
    #allocation3 [shape = 's32[2]{0}', space=sflag, size = 0x8, scoped, tag = 'scoped memory for matmul.1']
    #allocation4 [shape = 's32[2]{0}', space=sflag, size = 0x8, scoped, tag = 'scoped memory for matmul.1']
    #allocation5 [shape = 'u8[16384]{0}', space=vmem, size = 0x4000, scoped, tag = 'input window, operand 1, single buffered']
    #allocation6 [shape = 's32[1]{0}', space=sflag, size = 0x4, scoped, tag = 'scoped memory for matmul.1']
    #allocation7 [shape = 'u8[65536]{0}', space=vmem, size = 0x10000, scoped, tag = 'output window, operand 0']
    %7 = vsyncpa [#allocation3], 0
    %s8 = scalar_lea.sflag [#allocation3], 1
    %9 = vsyncpa %s8, 0
    %10 = vsyncpa [#allocation6], 0
    %11 = vsyncpa [#allocation4], 0
    %s12 = scalar_lea.sflag [#allocation4], 1
    %13 = vsyncpa %s12, 0
    loop: start=0, step=1, limit=4
    $region2: #{matmul.1} parent=1 // loop_pre_header
      _
    $region3: #{matmul.1} parent=1 // loop_header
      %s15 = sphi 0, %s19
      %p16 = scmp.ge.s32.totalorder %s15, 4
      %s22 = sphi 0, %s34
      %s23 = sphi 0, %s30
      %s24 = sphi 0, %s22
      %s25 = sphi 0, %s23
      %s26 = sphi 0, %s24
      %s27 = sphi 0, %s25
      %s39 = sphi 0, %s41
      %s42 = sphi 0, %s39
      %s43 = sphi 0, %s42
      %s59 = sphi 0, %s43
      %s63 = sphi 0, %s63
      %s65 = sphi 0, %s63
      %s66 = sphi 0, %s65
      %s80 = sphi 0, %s66
      %s88 = sphi 0, %s90
      %s91 = sphi 0, %s88
      %s92 = sphi 0, %s91
      %s108 = sphi 0, %s92
    $region4: #{matmul.1} parent=1 // loop_header_branch
      %18 = sbr.rel (%p16) target = $region8
    $region5: #{matmul.1} parent=1 // loop_body
      %s20 = ssub.s32 %s15, 1
      %s21 = ssub.s32 %s15, 2
      %s28 = sadd.s32 1, %s23
      %p29 = scmp.ge.s32.totalorder %s28, 1
      %s30 = scalar_select %p29, 0, %s28
      %s31 = sadd.s32 1, %s22
      %s32 = scalar_select %p29, %s31, %s22
      %p33 = scmp.ge.s32.totalorder %s32, 2
      %s34 = scalar_select %p33, 0, %s32
      %s35 = ssub.s32 %s22, %s34
      %s36 = ssub.s32 %s23, %s30
      %s37 = sor.u32 %s35, %s36
      %p38 = scmp.eq.s32.totalorder %s37, 0
      %s40 = sadd.s32 %s39, 1
      %s41 = scalar_select %p38, %s39, %s40
      %p44 = pneg %p38
      %p45 = scmp.eq.s32.totalorder %s15, 1
      %p46 = por %p44, %p45
      %p47 = scmp.ne.s32.totalorder %s39, %s42
      %p48 = scmp.eq.s32.totalorder %s15, 0
      %p49 = por %p47, %p48
      %p50 = scmp.ne.s32.totalorder %s39, %s42
      %p51 = scmp.eq.s32.totalorder %s20, 1
      %p52 = por %p50, %p51
      %p53 = scmp.ne.s32.totalorder %s42, %s43
      %p54 = scmp.eq.s32.totalorder %s20, 0
      %p55 = por %p53, %p54
      %p56 = scmp.ne.s32.totalorder %s42, %s43
      %p57 = scmp.eq.s32.totalorder %s21, 1
      %p58 = por %p56, %p57
      %p60 = scmp.ne.s32.totalorder %s43, %s59
      %p61 = scmp.eq.s32.totalorder %s21, 0
      %p62 = por %p60, %p61
      %s64 = sadd.s32 %s63, 1
      %p67 = scmp.eq.s32.totalorder %s15, 1
      %p68 = scmp.ne.s32.totalorder %s63, %s65
      %p69 = scmp.eq.s32.totalorder %s15, 0
      %p70 = por %p68, %p69
      %p71 = scmp.ne.s32.totalorder %s63, %s65
      %p72 = scmp.eq.s32.totalorder %s20, 1
      %p73 = por %p71, %p72
      %p74 = scmp.ne.s32.totalorder %s65, %s66
      %p75 = scmp.eq.s32.totalorder %s20, 0
      %p76 = por %p74, %p75
      %p77 = scmp.ne.s32.totalorder %s65, %s66
      %p78 = scmp.eq.s32.totalorder %s21, 1
      %p79 = por %p77, %p78
      %p81 = scmp.ne.s32.totalorder %s66, %s80
      %p82 = scmp.eq.s32.totalorder %s21, 0
      %p83 = por %p81, %p82
      %s84 = ssub.s32 %s22, %s34
      %s85 = ssub.s32 %s23, %s30
      %s86 = sor.u32 %s84, %s85
      %p87 = scmp.eq.s32.totalorder %s86, 0
      %s89 = sadd.s32 %s88, 1
      %s90 = scalar_select %p87, %s88, %s89
      %p93 = pneg %p87
      %p94 = scmp.eq.s32.totalorder %s15, 1
      %p95 = por %p93, %p94
      %p96 = scmp.ne.s32.totalorder %s88, %s91
      %p97 = scmp.eq.s32.totalorder %s15, 0
      %p98 = por %p96, %p97
      %p99 = scmp.ne.s32.totalorder %s88, %s91
      %p100 = scmp.eq.s32.totalorder %s20, 1
      %p101 = por %p99, %p100
      %p102 = scmp.ne.s32.totalorder %s91, %s92
      %p103 = scmp.eq.s32.totalorder %s20, 0
      %p104 = por %p102, %p103
      %p105 = scmp.ne.s32.totalorder %s91, %s92
      %p106 = scmp.eq.s32.totalorder %s21, 1
      %p107 = por %p105, %p106
      %p109 = scmp.ne.s32.totalorder %s92, %s108
      %p110 = scmp.eq.s32.totalorder %s21, 0
      %p111 = por %p109, %p110
      %p112 = scmp.le.s32.totalorder 1, %s15
      %p113 = scmp.lt.s32.totalorder %s15, 3
      %p114 = pnand %p112, %p113
      %p115 = pneg %p114
      // Predicated region
      $region9: #{matmul.1} parent=5 // pred_check
        _
      $region10: #{matmul.1} parent=5 // pred_check_branch
        %117 = sbr.rel (%p114) target = $region12
      $region11: #{matmul.1} parent=5 // pred_region
        %s118 = ssub.s32 %s15, 1
        // Predicated region
        $region13: #{matmul.1} parent=11 // pred_check
          %p119 = pneg %p76
        $region14: #{matmul.1} parent=11 // pred_check_branch
          %121 = sbr.rel (%p119) target = $region16
        $region15: #{matmul.1} parent=11 // pred_region
          %s123 = ssub.s32 512, 512
          %124 = vsyncadd [#allocation6], %s123
          %s125 = sshll.u32 [#allocation5], 4
          %s126 = int_to_ptr.vmem [resolvable:$true] %s125
          %131 = dma.hbm_to_vmem [thread:$0]  %s1, 512, %s126, [#allocation6], 128, 128, 8
        $region16: #{matmul.1} parent=11 // pred_fallthru
          _
      $region12: #{matmul.1} parent=5 // pred_fallthru
        _
      %p132 = scmp.lt.s32.totalorder %s15, 2
      // Predicated region
      $region17: #{matmul.1} parent=5 // pred_check
        %p133 = pneg %p132
      $region18: #{matmul.1} parent=5 // pred_check_branch
        %135 = sbr.rel (%p133) target = $region20
      $region19: #{matmul.1} parent=5 // pred_region
        // Predicated region
        $region21: #{matmul.1} parent=19 // pred_check
          %p136 = pneg %p49
        $region22: #{matmul.1} parent=19 // pred_check_branch
          %138 = sbr.rel (%p136) target = $region24
        $region23: #{matmul.1} parent=19 // pred_region
          %s139 = sand.u32 %s39, 1
          %s140 = scalar_lea.sflag [#allocation3], %s139
          %s141 = sand.u32 %s39, 1
          %s142 = smul.addr %s141, 64
          %s143 = scalar_lea.vmem [#allocation2], %s142
          %s144 = smul.u32 8, %s23
          %s146 = ssub.s32 1024, 1024
          %147 = vsyncadd %s140, %s146
          %s148 = smul.addr %s22, 8
          %s149 = sadd.s32 %s144, %s148
          %s150 = smul.addr %s149, 128
          %s151 = scalar_lea.hbm %s0, %s150
          %s152 = sshll.u32 %s143, 4
          %s153 = int_to_ptr.vmem [resolvable:$true] %s152
          %158 = dma.hbm_to_vmem [thread:$0]  %s151, 1024, %s153, %s140, 128, 128, 8
        $region24: #{matmul.1} parent=19 // pred_fallthru
          _
      $region20: #{matmul.1} parent=5 // pred_fallthru
        _
      %p159 = scmp.le.s32.totalorder 1, %s15
      %p160 = scmp.lt.s32.totalorder %s15, 3
      %p161 = pnand %p159, %p160
      %p162 = pneg %p161
      // Predicated region
      $region25: #{matmul.1} parent=5 // pred_check
        _
      $region26: #{matmul.1} parent=5 // pred_check_branch
        %164 = sbr.rel (%p161) target = $region28
      $region27: #{matmul.1} parent=5 // pred_region
        %s165 = ssub.s32 %s15, 1
        %s166 = sand.u32 %s42, 1
        %s167 = scalar_lea.sflag [#allocation3], %s166
        %s168 = sand.u32 %s42, 1
        %s169 = smul.addr %s168, 64
        %s170 = scalar_lea.vmem [#allocation2], %s169
        // Predicated region
        $region29: #{matmul.1} parent=27 // pred_check
          %p171 = pneg %p55
        $region30: #{matmul.1} parent=27 // pred_check_branch
          %173 = sbr.rel (%p171) target = $region32
        $region31: #{matmul.1} parent=27 // pred_region
          %174 = dma.done %s167, 1024
        $region32: #{matmul.1} parent=27 // pred_fallthru
          _
        // Predicated region
        $region33: #{matmul.1} parent=27 // pred_check
          %p175 = pneg %p76
        $region34: #{matmul.1} parent=27 // pred_check_branch
          %177 = sbr.rel (%p175) target = $region36
        $region35: #{matmul.1} parent=27 // pred_region
          %178 = dma.done [#allocation6], 512
        $region36: #{matmul.1} parent=27 // pred_fallthru
          _
        %s179 = sand.u32 %s42, 1
        %s180 = scalar_lea.sflag [#allocation3], %s179
        %s181 = sand.u32 %s42, 1
        %s182 = smul.addr %s181, 64
        %s183 = scalar_lea.vmem [#allocation2], %s182
        %p184 = pneg %p55
        %p185 = pneg %p52
        %p186 = pneg %p76
        %p187 = pneg %p73
        %p188 = pneg %p104
        %p189 = pneg %p101
        %s190 = sand.u32 %s91, 1
        %s191 = scalar_lea.sflag [#allocation4], %s190
        %s192 = sand.u32 %s91, 1
        %s193 = smul.addr %s192, 64
        %s194 = scalar_lea.vmem [#allocation7], %s193
        %s195 = smul.u32 8, %s25
        %s196 = smul.u32 8, %s25
        %v197 = vld [vmem:[%s170] sm:$0xff]
        %v198 = vld [vmem:[%s170 + $0x8] sm:$0xff]
        %v199 = vld [vmem:[%s170 + $0x10] sm:$0xff]
        %v200 = vld [vmem:[%s170 + $0x18] sm:$0xff]
        %v201 = vld [vmem:[%s170 + $0x20] sm:$0xff]
        %v202 = vld [vmem:[%s170 + $0x28] sm:$0xff]
        %v203 = vld [vmem:[%s170 + $0x30] sm:$0xff]
        %v204 = vld [vmem:[%s170 + $0x38] sm:$0xff]
        %v205 = vld [vmem:[#allocation5] sm:$0xff]
        %v206 = vld [vmem:[#allocation5 + $0x8] sm:$0xff]
        %v207 = vld [vmem:[#allocation5 + $0x10] sm:$0xff]
        %v208 = vld [vmem:[#allocation5 + $0x18] sm:$0x7]
        %vm209 = vcmask 220160
        %v211 = vsel %vm209, %v197, 0
        %v214 = vsel %vm209, %v198, 0
        %v217 = vsel %vm209, %v199, 0
        %v220 = vsel %vm209, %v200, 0
        %v223 = vsel %vm209, %v201, 0
        %v226 = vsel %vm209, %v202, 0
        %v229 = vsel %vm209, %v203, 0
        %v232 = vsel %vm209, %v204, 0
        %vm234 = vcmask 1042432
        %v236 = vsel %vm234, %v208, 0
        %238 = vmatprep.subr.mxu0 0.0
        %239 = vmatpush1.msra.mxu0 %v205
        %240 = vmatprep.subr.mxu0 0.0
        %241 = vmatpush1.msra.mxu0 %v206
        %242 = vmatprep.subr.mxu0 0.0
        %243 = vmatpush1.msra.mxu0 %v207
        %244 = vmatprep.subr.mxu0 0.0
        %245 = vmatpush1.msra.mxu0 %v236
        %246 = vmatprep.subr.mxu0 0.0
        %247 = vmatpush1.msra.mxu0 0.0
        %248 = vmatprep.subr.mxu0 0.0
        %249 = vmatpush1.msra.mxu0 0.0
        %250 = vmatprep.subr.mxu0 0.0
        %251 = vmatpush1.msra.mxu0 0.0
        %252 = vmatprep.subr.mxu0 0.0
        %253 = vmatpush1.msra.mxu0 0.0
        %254 = vmatprep.subr.mxu0 0.0
        %255 = vmatpush1.msra.mxu0 0.0
        %256 = vmatprep.subr.mxu0 0.0
        %257 = vmatpush1.msra.mxu0 0.0
        %258 = vmatprep.subr.mxu0 0.0
        %259 = vmatpush1.msra.mxu0 0.0
        %260 = vmatprep.subr.mxu0 0.0
        %261 = vmatpush1.msra.mxu0 0.0
        %262 = vmatprep.subr.mxu0 0.0
        %263 = vmatpush1.msra.mxu0 0.0
        %264 = vmatprep.subr.mxu0 0.0
        %265 = vmatpush1.msra.mxu0 0.0
        %266 = vmatprep.subr.mxu0 0.0
        %267 = vmatpush1.msra.mxu0 0.0
        %268 = vmatprep.subr.mxu0 0.0
        %269 = vmatpush1.msra.mxu0 0.0
        %270 = vmatprep.subr.mxu0 0.0
        %271 = vmatpush1.msra.mxu0 0.0
        %272 = vmatprep.subr.mxu0 0.0
        %273 = vmatpush1.msra.mxu0 0.0
        %274 = vmatprep.subr.mxu0 0.0
        %275 = vmatpush1.msra.mxu0 0.0
        %276 = vmatprep.subr.mxu0 0.0
        %277 = vmatpush1.msra.mxu0 0.0
        %278 = vmatprep.subr.mxu0 0.0
        %279 = vmatpush1.msra.mxu0 0.0
        %280 = vmatprep.subr.mxu0 0.0
        %281 = vmatpush1.msra.mxu0 0.0
        %282 = vmatprep.subr.mxu0 0.0
        %283 = vmatpush1.msra.mxu0 0.0
        %284 = vmatprep.subr.mxu0 0.0
        %285 = vmatpush1.msra.mxu0 0.0
        %286 = vmatprep.subr.mxu0 0.0
        %287 = vmatpush1.msra.mxu0 0.0
        %288 = vmatprep.subr.mxu0 0.0
        %289 = vmatpush1.msra.mxu0 0.0
        %290 = vmatprep.subr.mxu0 0.0
        %291 = vmatpush1.msra.mxu0 0.0
        %292 = vmatprep.subr.mxu0 0.0
        %293 = vmatpush1.msra.mxu0 0.0
        %294 = vmatprep.subr.mxu0 0.0
        %295 = vmatpush1.msra.mxu0 0.0
        %296 = vmatprep.subr.mxu0 0.0
        %297 = vmatpush1.msra.mxu0 0.0
        %298 = vmatprep.subr.mxu0 0.0
        %299 = vmatpush1.msra.mxu0 0.0
        %300 = vmatprep.subr.mxu0 0.0
        %301 = vmatpush1.msra.mxu0 0.0
        %302 = vmatprep.mubr.f32.mxu0 0.0
        %303 = vmatmul.mubr.f32.gmra.mrb[0].mxu0 %v211
        %v304 = vpop.f32.mrb[0].mxu0
        %v305 = vadd.f32 0.0, %v304
        %v306 = vpop.f32.mrb[0].mxu0
        %307 = vmatprep.mubr.f32.mxu0 0.0
        %308 = vmatmul.mubr.f32.gmra.mrb[0].mxu0 %v214
        %v309 = vpop.f32.mrb[0].mxu0
        %v310 = vadd.f32 0.0, %v309
        %v311 = vpop.f32.mrb[0].mxu0
        %312 = vmatprep.mubr.f32.mxu0 0.0
        %313 = vmatmul.mubr.f32.gmra.mrb[0].mxu0 %v217
        %v314 = vpop.f32.mrb[0].mxu0
        %v315 = vadd.f32 0.0, %v314
        %v316 = vpop.f32.mrb[0].mxu0
        %317 = vmatprep.mubr.f32.mxu0 0.0
        %318 = vmatmul.mubr.f32.gmra.mrb[0].mxu0 %v220
        %v319 = vpop.f32.mrb[0].mxu0
        %v320 = vadd.f32 0.0, %v319
        %v321 = vpop.f32.mrb[0].mxu0
        %322 = vmatprep.mubr.f32.mxu0 0.0
        %323 = vmatmul.mubr.f32.gmra.mrb[0].mxu0 %v223
        %v324 = vpop.f32.mrb[0].mxu0
        %v325 = vadd.f32 0.0, %v324
        %v326 = vpop.f32.mrb[0].mxu0
        %327 = vmatprep.mubr.f32.mxu0 0.0
        %328 = vmatmul.mubr.f32.gmra.mrb[0].mxu0 %v226
        %v329 = vpop.f32.mrb[0].mxu0
        %v330 = vadd.f32 0.0, %v329
        %v331 = vpop.f32.mrb[0].mxu0
        %332 = vmatprep.mubr.f32.mxu0 0.0
        %333 = vmatmul.mubr.f32.gmra.mrb[0].mxu0 %v229
        %v334 = vpop.f32.mrb[0].mxu0
        %v335 = vadd.f32 0.0, %v334
        %v336 = vpop.f32.mrb[0].mxu0
        %337 = vmatprep.mubr.f32.mxu0 0.0
        %338 = vmatmul.mubr.f32.gmra.mrb[0].mxu0 %v232
        %v339 = vpop.f32.mrb[0].mxu0
        %v340 = vadd.f32 0.0, %v339
        %v341 = vpop.f32.mrb[0].mxu0
        %342 = vdwg.mxu0
        %vm343 = vcmask 64512
        %344 = vst.msk [vmem:[%s194] sm:$0xff] %vm343, %v305
        %345 = vst.msk [vmem:[%s194 + $0x8] sm:$0xff] %vm343, %v310
        %346 = vst.msk [vmem:[%s194 + $0x10] sm:$0xff] %vm343, %v315
        %347 = vst.msk [vmem:[%s194 + $0x18] sm:$0xff] %vm343, %v320
        %348 = vst.msk [vmem:[%s194 + $0x20] sm:$0xff] %vm343, %v325
        %349 = vst.msk [vmem:[%s194 + $0x28] sm:$0xff] %vm343, %v330
        %350 = vst.msk [vmem:[%s194 + $0x30] sm:$0xff] %vm343, %v335
        %351 = vst.msk [vmem:[%s194 + $0x38] sm:$0xff] %vm343, %v340
        %s352 = sand.u32 %s91, 1
        %s353 = scalar_lea.sflag [#allocation4], %s352
        %s354 = sand.u32 %s91, 1
        %s355 = smul.addr %s354, 64
        %s356 = scalar_lea.vmem [#allocation7], %s355
        // Predicated region
        $region37: #{matmul.1} parent=27 // pred_check
          %p357 = pneg %p101
        $region38: #{matmul.1} parent=27 // pred_check_branch
          %359 = sbr.rel (%p357) target = $region40
        $region39: #{matmul.1} parent=27 // pred_region
          %s360 = smul.u32 8, %s25
          %s362 = ssub.s32 1024, 1024
          %363 = vsyncadd %s353, %s362
          %s364 = smul.addr %s24, 8
          %s365 = sadd.s32 %s360, %s364
          %s366 = smul.addr %s365, 128
          %s367 = scalar_lea.hbm %s2, %s366
          %s368 = sshll.u32 %s356, 4
          %s369 = int_to_ptr.vmem [resolvable:$true] %s368
          %374 = dma.vmem_to_hbm [thread:$0]  %s369, 1024, %s367, %s353, 128, 128, 8
        $region40: #{matmul.1} parent=27 // pred_fallthru
          _
      $region28: #{matmul.1} parent=5 // pred_fallthru
        _
      %p375 = scmp.le.s32.totalorder 2, %s15
      // Predicated region
      $region41: #{matmul.1} parent=5 // pred_check
        %p376 = pneg %p375
      $region42: #{matmul.1} parent=5 // pred_check_branch
        %378 = sbr.rel (%p376) target = $region44
      $region43: #{matmul.1} parent=5 // pred_region
        %s379 = ssub.s32 %s15, 2
        // Predicated region
        $region45: #{matmul.1} parent=43 // pred_check
          %p380 = pneg %p107
        $region46: #{matmul.1} parent=43 // pred_check_branch
          %382 = sbr.rel (%p380) target = $region48
        $region47: #{matmul.1} parent=43 // pred_region
          %s383 = sand.u32 %s92, 1
          %s384 = scalar_lea.sflag [#allocation4], %s383
          %s385 = sand.u32 %s92, 1
          %s386 = smul.addr %s385, 64
          %s387 = scalar_lea.vmem [#allocation7], %s386
          %388 = dma.done %s384, 1024
        $region48: #{matmul.1} parent=43 // pred_fallthru
          _
      $region44: #{matmul.1} parent=5 // pred_fallthru
        _
    $region6: #{matmul.1} parent=1 // loop_footer
      %s19 = sadd.s32 1, %s15
    $region7: #{matmul.1} parent=1 // loop_footer_branch
      %14 = sbr.rel target = $region3
    $region8: #{matmul.1} parent=1 // loop_exit
      _
    %389 = vsyncpa [#allocation3], 1
    %s390 = scalar_lea.sflag [#allocation3], 1
    %391 = vsyncpa %s390, 1
    %392 = vsyncpa [#allocation6], 1
    %393 = vsyncpa [#allocation4], 1
    %s394 = scalar_lea.sflag [#allocation4], 1
    %395 = vsyncpa %s394, 1

</llo_original>
